<compile_context>
chip_gen: v5e
topology: v5e:2x2
jax: 0.10.0
libtpu: 0.0.40
codegen_flags: <defaults>
</compile_context>

<pallas_src>
import functools
import math

import jax
import jax.numpy as jnp
from jax.experimental import pallas as pl
from jax.experimental.pallas import tpu as pltpu

_XLA_FALLBACK_BYTES = 512 * 1024  # below this, a fused XLA multiply wins


def _dropconnect_kernel(x_ref, s_ref, o_ref, *, inv_keep):
    """out = x * binary * (1/keep_prob).

    s_ref is either the (TM, 1) f32 per-row binary decision (fast path) or the
    (TM, TN) int8 pre-expanded binary mask (lane-dense fold path); both broadcast
    against the (TM, TN) input tile.  The kernel is HBM-bound, so the cast and the
    two multiplies are free filler on the VPU.
    """
    s = s_ref[...].astype(jnp.float32) * inv_keep
    o_ref[...] = (x_ref[...].astype(jnp.float32) * s).astype(o_ref.dtype)


def _tpu_info():
    """(per-core VMEM bytes, has-2-TensorCores) with conservative fallbacks."""
    vmem_cap = 64 * 1024 * 1024  # smallest across generations (v7x per-TC)
    multi_core = False           # don't force extra grid steps if unsure
    try:
        info = pltpu.get_tpu_info()
        vmem_cap = int(getattr(info, "vmem_capacity_bytes", vmem_cap))
        # v7x is the only generation with 2 TensorCores per chip and also the only
        # one with 64 MiB (not 128 MiB) VMEM per core; use that as the detection
        # proxy rather than depending on chip-version enum names.
        multi_core = vmem_cap < 100 * 1024 * 1024
    except Exception:  # query unavailable (older jax / interpret mode)
        pass
    return vmem_cap, multi_core


def _sublane_multiple(*itemsizes):
    # Packed-sublane row tile: f32 -> 8, bf16/f16 -> 16, int8/fp8 -> 32.
    return max(max(8, 32 // i) for i in itemsizes)


def _choose_tiles(rows, cols, x_itemsize, s_itemsize, multi_core, vmem_cap):
    """Pick a (TM, TN) block: as big as the VMEM budget allows, lane-dense,
    dtype-aligned rows, and >= 2 grid blocks only when a second TensorCore
    actually exists to use them."""
    usable = max(16 * 1024 * 1024, vmem_cap - 16 * 1024 * 1024)
    # ~2 buffers x (in + out + scale) live per step; block-size gains plateau.
    target = min(12 * 1024 * 1024, usable // 6)
    sub = _sublane_multiple(x_itemsize, s_itemsize)

    # Lane (last-dim) tile: full width whenever possible (lane-dense when
    # cols % 128 == 0); only split truly enormous widths so a sub-deep block
    # still fits the byte budget.
    if cols % 128 == 0:
        tn_cap = max(128, (target // (sub * x_itemsize)) // 128 * 128)
        tn = cols if cols <= tn_cap else tn_cap
    else:
        tn = cols  # full extent is always a legal block; stores are masked here.

    # Row tile: fill the byte budget, rounded to the packed-sublane multiple.
    rows_target = max(1, target // max(1, tn * x_itemsize))
    if rows_target >= rows:
        tm = rows
    else:
        tm = min(rows, max(sub, (rows_target // sub) * sub))

    # Megacore (v7x only): guarantee >= 2 blocks on a parallel axis when the grid
    # would otherwise be (1, 1), preferring a lane-axis split (stays a multiple
    # of 128, no row split needed).
    if multi_core and pl.cdiv(rows, tm) * pl.cdiv(cols, tn) == 1:
        if tn >= 256 and tn % 128 == 0:
            tn = ((tn // 2 + 127) // 128) * 128
        elif rows > sub:
            half = (rows + 1) // 2
            tm = min(rows, max(sub, ((half + sub - 1) // sub) * sub))
    return tm, tn


def _padded_block_bytes(r, c, itemsize):
    # VMEM blocks are laid out in (8, 128)-tile multiples.
    return (-(-r // 8) * 8) * (-(-c // 128) * 128) * itemsize


def _vmem_limit(tm, tn, x_itemsize, s_cols, s_itemsize, vmem_cap):
    x_blk = _padded_block_bytes(tm, tn, x_itemsize)
    o_blk = x_blk
    s_blk = _padded_block_bytes(tm, s_cols, s_itemsize)  # (tm,1) pads to (tm,128)
    limit = 2 * (x_blk + o_blk + s_blk) + (8 << 20)      # double-buffered + slack
    limit = max(limit, 32 << 20)
    return int(min(limit, vmem_cap - (4 << 20)))


def dropconnect(x, p, key):
    """DropConnect forward matching the PyTorch module.  x: (B, C, H, W)."""
    B, C, H, W = x.shape
    keep_prob = 1.0 - float(p)
    if keep_prob <= 0.0:  # p == 1: everything dropped; avoid an inf/nan scale.
        return jnp.zeros_like(x)
    inv_keep = 1.0 / keep_prob

    # Per-(batch, channel) decision, drawn and kept in f32 (unbiased for narrow
    # input dtypes); only the final product is cast back to x.dtype.
    rand = jax.random.uniform(key, (B, C), dtype=jnp.float32)
    binary = jnp.floor(keep_prob + rand)  # 0.0 / 1.0

    rows, cols = B * C, H * W

    # Tiny tensors: pallas_call fixed cost dominates; fused XLA is strictly faster.
    if rows * cols * x.dtype.itemsize < _XLA_FALLBACK_BYTES:
        scale = (binary * inv_keep)[:, :, None, None]
        return (x.astype(jnp.float32) * scale).astype(x.dtype)

    # ---- choose the flattened 2-D view -------------------------------------
    g = 1 if cols % 128 == 0 else 128 // math.gcd(cols, 128)
    if g > 1 and rows % g == 0:
        # Lane-dense fold: (B*C, H*W) -> (B*C/g, g*H*W).  The binary decision now
        # varies within a row, so stream it as a pre-expanded int8 mask
        # (+1 byte/elem of HBM read) instead of a (rows, 1) column; in exchange
        # every output store is an unmasked full-128-lane vst.
        rows, cols = rows // g, cols * g
        x2 = x.reshape(rows, cols)
        s2 = jnp.broadcast_to(
            binary.astype(jnp.int8).reshape(rows, g, 1), (rows, g, H * W)
        ).reshape(rows, cols)
        scale_is_full = True
    else:
        # cols is already a multiple of 128 (fast path) or B*C doesn't divide by
        # g (rare); the scale stays a tiny (rows, 1) f32 column.
        x2 = x.reshape(rows, cols)
        s2 = binary.reshape(rows, 1)
        scale_is_full = False

    vmem_cap, multi_core = _tpu_info()
    tm, tn = _choose_tiles(rows, cols, x.dtype.itemsize, s2.dtype.itemsize,
                           multi_core, vmem_cap)
    grid = (pl.cdiv(rows, tm), pl.cdiv(cols, tn))

    if scale_is_full:
        s_spec = pl.BlockSpec((tm, tn), lambda i, j: (i, j))
        s_cols = tn
    else:
        # Constant block index along j => Pallas won't re-DMA the column per j.
        s_spec = pl.BlockSpec((tm, 1), lambda i, j: (i, 0))
        s_cols = 1

    kernel = functools.partial(_dropconnect_kernel, inv_keep=inv_keep)
    # TODO(synk): expose input_output_aliases={0: 0} when callers can donate x;
    # it halves peak HBM footprint but gives no bandwidth win for this kernel.
    out = pl.pallas_call(
        kernel,
        out_shape=jax.ShapeDtypeStruct((rows, cols), x.dtype),
        grid_spec=pltpu.PrefetchScalarGridSpec(
            num_scalar_prefetch=0,
            grid=grid,
            in_specs=[pl.BlockSpec((tm, tn), lambda i, j: (i, j)), s_spec],
            out_specs=pl.BlockSpec((tm, tn), lambda i, j: (i, j)),
        ),
        compiler_params=pltpu.CompilerParams(
            dimension_semantics=("parallel", "parallel"),
            vmem_limit_bytes=_vmem_limit(tm, tn, x.dtype.itemsize,
                                         s_cols, s2.dtype.itemsize, vmem_cap),
        ),
    )(x2, s2)

    return out.reshape(B, C, H, W)


def _dropconnect_ref(x, p, key):
    B, C, _, _ = x.shape
    keep_prob = 1.0 - float(p)
    rand = jax.random.uniform(key, (B, C), dtype=jnp.float32)
    binary = jnp.floor(keep_prob + rand).astype(x.dtype)[:, :, None, None]
    return x / keep_prob * binary


if __name__ == "__main__":
    key = jax.random.PRNGKey(0)
    k0, k1, k2, k3, k_drop = jax.random.split(key, 5)
    p = 0.3

    def check(x, name):
        out = jax.block_until_ready(dropconnect(x, p, k_drop))
        ref = _dropconnect_ref(x, p, k_drop)
        assert out.shape == x.shape and out.dtype == x.dtype, name
        assert jnp.allclose(out, ref, atol=1e-5, rtol=1e-5), name

    # Module-default small shape (tiny -> fused XLA path).
    check(jax.random.normal(k0, (2, 4, 16, 16), dtype=jnp.float32), "tiny")
    # B*C not a multiple of 8 (also tiny path; no host-side padding anywhere).
    check(jax.random.normal(k1, (3, 5, 16, 16), dtype=jnp.float32), "ragged_rows")
    # Pallas fast path: H*W = 1024 is a multiple of 128.
    check(jax.random.normal(k2, (8, 32, 32, 32), dtype=jnp.float32), "pallas_128")
    # Pallas lane-dense fold path: 14x14 maps, fold 32 channels into the lane axis.
    check(jax.random.normal(k3, (8, 96, 14, 14), dtype=jnp.float32), "pallas_fold")

    print("KERNEL_OK")
</pallas_src>

<mosaic_0001>
module attributes {stable_mosaic.version = 11 : i64} {
  func.func @_dropconnect_kernel(%arg0: i32, %arg1: i32, %arg2: memref<256x1024xf32, #tpu.memory_space<vmem>>, %arg3: memref<256x1xf32, #tpu.memory_space<vmem>>, %arg4: memref<256x1024xf32, #tpu.memory_space<vmem>>) attributes {dimension_semantics = [#tpu.dimension_semantics<parallel>, #tpu.dimension_semantics<parallel>], iteration_bounds = array<i64: 1, 1>, scalar_prefetch = 0 : i64, scratch_operands = 0 : i64, tpu.core_type = #tpu.core_type<tc>, window_params = [{transform_indices = @transform_0, window_bounds = array<i64: 256, 1024>}, {transform_indices = @transform_1, window_bounds = array<i64: 256, 1>}, {transform_indices = @transform_2, window_bounds = array<i64: 256, 1024>}]} {
    %c0 = arith.constant 0 : index
    %c0_0 = arith.constant 0 : index
    %0 = vector.load %arg3[%c0, %c0_0] : memref<256x1xf32, #tpu.memory_space<vmem>>, vector<256x1xf32>
    %cst = arith.constant 1.42857146 : f32
    %1 = vector.broadcast %cst : f32 to vector<256x1xf32>
    %2 = arith.mulf %0, %1 : vector<256x1xf32>
    %c0_1 = arith.constant 0 : index
    %c0_2 = arith.constant 0 : index
    %3 = vector.load %arg2[%c0_1, %c0_2] : memref<256x1024xf32, #tpu.memory_space<vmem>>, vector<256x1024xf32>
    %4 = vector.broadcast %2 : vector<256x1xf32> to vector<256x1024xf32>
    %5 = arith.mulf %3, %4 : vector<256x1024xf32>
    %c0_3 = arith.constant 0 : index
    %c0_4 = arith.constant 0 : index
    %6 = vector.load %arg4[%c0_3, %c0_4] : memref<256x1024xf32, #tpu.memory_space<vmem>>, vector<256x1024xf32>
    tpu.vector_store %arg4[%c0_3, %c0_4], %5 {strides = array<i32>} : memref<256x1024xf32, #tpu.memory_space<vmem>>, vector<256x1024xf32>,
    return
  }
  func.func @transform_0(%arg0: i32, %arg1: i32) -> (i32, i32) {
    %c0_i32 = arith.constant 0 : i32
    return %arg0, %arg1 : i32, i32
  }
  func.func @transform_1(%arg0: i32, %arg1: i32) -> (i32, i32) {
    %c0_i32 = arith.constant 0 : i32
    %c0_i32_0 = arith.constant 0 : i32
    return %arg0, %c0_i32 : i32, i32
  }
  func.func @transform_2(%arg0: i32, %arg1: i32) -> (i32, i32) {
    %c0_i32 = arith.constant 0 : i32
    return %arg0, %arg1 : i32, i32
  }
}

</mosaic_0001>

<llo_original>
// kernel: tpu_custom_call.1
$region0: #{tpu_custom_call.1}
  #allocation0 [shape = 'u32[]', space=smem, size = 0x4, offset = 0x4, fixed_abs, tag = 'smem constant byte address 0x4 - core index']
  #allocation1 [shape = 'u32[72,128]{1,0:T(1,128)}', space=vmem, size = 0x9000, scoped, tag = 'internal scratch']
  %s0 = inlined_call_operand.hbm [shape: f32[256,1024], index: 0, kind: input, shape index: {}]
  %s1 = inlined_call_operand.vmem [shape: f32[256,1], index: 1, kind: input, shape index: {}]
  %s2 = inlined_call_operand.hbm [shape: f32[256,1024], index: 2, kind: output, shape index: {}]
  %s3 = sld [smem:[#allocation0]]
  $region22: #{tpu_custom_call.1} parent=0
    _
  %s5 = ssub.s32 1, %s3
  %s6 = scalar_select 0, %s5, %s3
  $region1: #{tpu_custom_call.1} parent=0
    #allocation2 [shape = 'u8[1048576]{0}', space=vmem, size = 0x100000, scoped, tag = 'input window, operand 0, single buffered']
    #allocation3 [shape = 's32[1]{0}', space=sflag, size = 0x4, scoped, tag = 'scoped memory for tpu_custom_call.1']
    #allocation4 [shape = 's32[1]{0}', space=sflag, size = 0x4, scoped, tag = 'scoped memory for tpu_custom_call.1']
    #allocation5 [shape = 'u8[1048576]{0}', space=vmem, size = 0x100000, scoped, tag = 'output window, operand 0, single buffered']
    %7 = vsyncpa [#allocation3], 0
    %8 = vsyncpa [#allocation4], 0
    // Predicated region
    $region2: #{tpu_custom_call.1} parent=1 // pred_check
      _
    $region3: #{tpu_custom_call.1} parent=1 // pred_check_branch
      %10 = sbr.rel (0) target = $region5
    $region4: #{tpu_custom_call.1} parent=1 // pred_region
      %12 = vsyncadd [#allocation3], 0
      %s13 = sshll.u32 %s0, 4
      %s14 = int_to_ptr.hbm [resolvable:$true] %s13
      %s15 = sshll.u32 [#allocation2], 4
      %s16 = int_to_ptr.vmem [resolvable:$true] %s15
      %21 = dma.hbm_to_vmem [thread:$0]  %s14, 32768, %s16, [#allocation3], 1024, 1024, 64
    $region5: #{tpu_custom_call.1} parent=1 // pred_fallthru
      _
    // Predicated region
    $region6: #{tpu_custom_call.1} parent=1 // pred_check
      _
    $region7: #{tpu_custom_call.1} parent=1 // pred_check_branch
      %23 = sbr.rel (0) target = $region9
    $region8: #{tpu_custom_call.1} parent=1 // pred_region
      _
    $region9: #{tpu_custom_call.1} parent=1 // pred_fallthru
      _
    // Predicated region
    $region10: #{tpu_custom_call.1} parent=1 // pred_check
      _
    $region11: #{tpu_custom_call.1} parent=1 // pred_check_branch
      %25 = sbr.rel (0) target = $region13
    $region12: #{tpu_custom_call.1} parent=1 // pred_region
      %27 = dma.done [#allocation3], 32768
    $region13: #{tpu_custom_call.1} parent=1 // pred_fallthru
      _
    %v28 = vld [vmem:[%s1] sm:$0xff]
    %v29 = vld [vmem:[%s1 + $0x8] sm:$0xff]
    %v30 = vld [vmem:[%s1 + $0x10] sm:$0xff]
    %v31 = vld [vmem:[%s1 + $0x18] sm:$0xff]
    %v32 = vld [vmem:[%s1 + $0x20] sm:$0xff]
    %v33 = vld [vmem:[%s1 + $0x28] sm:$0xff]
    %v34 = vld [vmem:[%s1 + $0x30] sm:$0xff]
    %v35 = vld [vmem:[%s1 + $0x38] sm:$0xff]
    %v36 = vld [vmem:[%s1 + $0x40] sm:$0xff]
    %v37 = vld [vmem:[%s1 + $0x48] sm:$0xff]
    %v38 = vld [vmem:[%s1 + $0x50] sm:$0xff]
    %v39 = vld [vmem:[%s1 + $0x58] sm:$0xff]
    %v40 = vld [vmem:[%s1 + $0x60] sm:$0xff]
    %v41 = vld [vmem:[%s1 + $0x68] sm:$0xff]
    %v42 = vld [vmem:[%s1 + $0x70] sm:$0xff]
    %v43 = vld [vmem:[%s1 + $0x78] sm:$0xff]
    %v44 = vld [vmem:[%s1 + $0x80] sm:$0xff]
    %v45 = vld [vmem:[%s1 + $0x88] sm:$0xff]
    %v46 = vld [vmem:[%s1 + $0x90] sm:$0xff]
    %v47 = vld [vmem:[%s1 + $0x98] sm:$0xff]
    %v48 = vld [vmem:[%s1 + $0xa0] sm:$0xff]
    %v49 = vld [vmem:[%s1 + $0xa8] sm:$0xff]
    %v50 = vld [vmem:[%s1 + $0xb0] sm:$0xff]
    %v51 = vld [vmem:[%s1 + $0xb8] sm:$0xff]
    %v52 = vld [vmem:[%s1 + $0xc0] sm:$0xff]
    %v53 = vld [vmem:[%s1 + $0xc8] sm:$0xff]
    %v54 = vld [vmem:[%s1 + $0xd0] sm:$0xff]
    %v55 = vld [vmem:[%s1 + $0xd8] sm:$0xff]
    %v56 = vld [vmem:[%s1 + $0xe0] sm:$0xff]
    %v57 = vld [vmem:[%s1 + $0xe8] sm:$0xff]
    %v58 = vld [vmem:[%s1 + $0xf0] sm:$0xff]
    %v59 = vld [vmem:[%s1 + $0xf8] sm:$0xff]
    %v60 = vmul.f32 %v28, 1.4285715
    %v61 = vmul.f32 %v29, 1.4285715
    %v62 = vmul.f32 %v30, 1.4285715
    %v63 = vmul.f32 %v31, 1.4285715
    %v64 = vmul.f32 %v32, 1.4285715
    %v65 = vmul.f32 %v33, 1.4285715
    %v66 = vmul.f32 %v34, 1.4285715
    %v67 = vmul.f32 %v35, 1.4285715
    %v68 = vmul.f32 %v36, 1.4285715
    %v69 = vmul.f32 %v37, 1.4285715
    %v70 = vmul.f32 %v38, 1.4285715
    %v71 = vmul.f32 %v39, 1.4285715
    %v72 = vmul.f32 %v40, 1.4285715
    %v73 = vmul.f32 %v41, 1.4285715
    %v74 = vmul.f32 %v42, 1.4285715
    %v75 = vmul.f32 %v43, 1.4285715
    %v76 = vmul.f32 %v44, 1.4285715
    %v77 = vmul.f32 %v45, 1.4285715
    %v78 = vmul.f32 %v46, 1.4285715
    %v79 = vmul.f32 %v47, 1.4285715
    %v80 = vmul.f32 %v48, 1.4285715
    %v81 = vmul.f32 %v49, 1.4285715
    %v82 = vmul.f32 %v50, 1.4285715
    %v83 = vmul.f32 %v51, 1.4285715
    %v84 = vmul.f32 %v52, 1.4285715
    %v85 = vmul.f32 %v53, 1.4285715
    %v86 = vmul.f32 %v54, 1.4285715
    %v87 = vmul.f32 %v55, 1.4285715
    %v88 = vmul.f32 %v56, 1.4285715
    %v89 = vmul.f32 %v57, 1.4285715
    %v90 = vmul.f32 %v58, 1.4285715
    %v91 = vmul.f32 %v59, 1.4285715
    %v92 = vld [vmem:[#allocation2] sm:$0xff]
    %v93 = vld [vmem:[#allocation2 + $0x8] sm:$0xff]
    %v94 = vld [vmem:[#allocation2 + $0x10] sm:$0xff]
    %v95 = vld [vmem:[#allocation2 + $0x18] sm:$0xff]
    %v96 = vld [vmem:[#allocation2 + $0x20] sm:$0xff]
    %v97 = vld [vmem:[#allocation2 + $0x28] sm:$0xff]
    %v98 = vld [vmem:[#allocation2 + $0x30] sm:$0xff]
    %v99 = vld [vmem:[#allocation2 + $0x38] sm:$0xff]
    %v100 = vld [vmem:[#allocation2 + $0x40] sm:$0xff]
    %v101 = vld [vmem:[#allocation2 + $0x48] sm:$0xff]
    %v102 = vld [vmem:[#allocation2 + $0x50] sm:$0xff]
    %v103 = vld [vmem:[#allocation2 + $0x58] sm:$0xff]
    %v104 = vld [vmem:[#allocation2 + $0x60] sm:$0xff]
    %v105 = vld [vmem:[#allocation2 + $0x68] sm:$0xff]
    %v106 = vld [vmem:[#allocation2 + $0x70] sm:$0xff]
    %v107 = vld [vmem:[#allocation2 + $0x78] sm:$0xff]
    %v108 = vld [vmem:[#allocation2 + $0x80] sm:$0xff]
    %v109 = vld [vmem:[#allocation2 + $0x88] sm:$0xff]
    %v110 = vld [vmem:[#allocation2 + $0x90] sm:$0xff]
    %v111 = vld [vmem:[#allocation2 + $0x98] sm:$0xff]
    %v112 = vld [vmem:[#allocation2 + $0xa0] sm:$0xff]
    %v113 = vld [vmem:[#allocation2 + $0xa8] sm:$0xff]
    %v114 = vld [vmem:[#allocation2 + $0xb0] sm:$0xff]
    %v115 = vld [vmem:[#allocation2 + $0xb8] sm:$0xff]
    %v116 = vld [vmem:[#allocation2 + $0xc0] sm:$0xff]
    %v117 = vld [vmem:[#allocation2 + $0xc8] sm:$0xff]
    %v118 = vld [vmem:[#allocation2 + $0xd0] sm:$0xff]
    %v119 = vld [vmem:[#allocation2 + $0xd8] sm:$0xff]
    %v120 = vld [vmem:[#allocation2 + $0xe0] sm:$0xff]
    %v121 = vld [vmem:[#allocation2 + $0xe8] sm:$0xff]
    %v122 = vld [vmem:[#allocation2 + $0xf0] sm:$0xff]
    %v123 = vld [vmem:[#allocation2 + $0xf8] sm:$0xff]
    %v124 = vld [vmem:[#allocation2 + $0x100] sm:$0xff]
    %v125 = vld [vmem:[#allocation2 + $0x108] sm:$0xff]
    %v126 = vld [vmem:[#allocation2 + $0x110] sm:$0xff]
    %v127 = vld [vmem:[#allocation2 + $0x118] sm:$0xff]
    %v128 = vld [vmem:[#allocation2 + $0x120] sm:$0xff]
    %v129 = vld [vmem:[#allocation2 + $0x128] sm:$0xff]
    %v130 = vld [vmem:[#allocation2 + $0x130] sm:$0xff]
    %v131 = vld [vmem:[#allocation2 + $0x138] sm:$0xff]
    %v132 = vld [vmem:[#allocation2 + $0x140] sm:$0xff]
    %v133 = vld [vmem:[#allocation2 + $0x148] sm:$0xff]
    %v134 = vld [vmem:[#allocation2 + $0x150] sm:$0xff]
    %v135 = vld [vmem:[#allocation2 + $0x158] sm:$0xff]
    %v136 = vld [vmem:[#allocation2 + $0x160] sm:$0xff]
    %v137 = vld [vmem:[#allocation2 + $0x168] sm:$0xff]
    %v138 = vld [vmem:[#allocation2 + $0x170] sm:$0xff]
    %v139 = vld [vmem:[#allocation2 + $0x178] sm:$0xff]
    %v140 = vld [vmem:[#allocation2 + $0x180] sm:$0xff]
    %v141 = vld [vmem:[#allocation2 + $0x188] sm:$0xff]
    %v142 = vld [vmem:[#allocation2 + $0x190] sm:$0xff]
    %v143 = vld [vmem:[#allocation2 + $0x198] sm:$0xff]
    %v144 = vld [vmem:[#allocation2 + $0x1a0] sm:$0xff]
    %v145 = vld [vmem:[#allocation2 + $0x1a8] sm:$0xff]
    %v146 = vld [vmem:[#allocation2 + $0x1b0] sm:$0xff]
    %v147 = vld [vmem:[#allocation2 + $0x1b8] sm:$0xff]
    %v148 = vld [vmem:[#allocation2 + $0x1c0] sm:$0xff]
    %v149 = vld [vmem:[#allocation2 + $0x1c8] sm:$0xff]
    %v150 = vld [vmem:[#allocation2 + $0x1d0] sm:$0xff]
    %v151 = vld [vmem:[#allocation2 + $0x1d8] sm:$0xff]
    %v152 = vld [vmem:[#allocation2 + $0x1e0] sm:$0xff]
    %v153 = vld [vmem:[#allocation2 + $0x1e8] sm:$0xff]
    %v154 = vld [vmem:[#allocation2 + $0x1f0] sm:$0xff]
    %v155 = vld [vmem:[#allocation2 + $0x1f8] sm:$0xff]
    %v156 = vld [vmem:[#allocation2 + $0x200] sm:$0xff]
    %v157 = vld [vmem:[#allocation2 + $0x208] sm:$0xff]
    %v158 = vld [vmem:[#allocation2 + $0x210] sm:$0xff]
    %v159 = vld [vmem:[#allocation2 + $0x218] sm:$0xff]
    %v160 = vld [vmem:[#allocation2 + $0x220] sm:$0xff]
    %v161 = vld [vmem:[#allocation2 + $0x228] sm:$0xff]
    %v162 = vld [vmem:[#allocation2 + $0x230] sm:$0xff]
    %v163 = vld [vmem:[#allocation2 + $0x238] sm:$0xff]
    %v164 = vld [vmem:[#allocation2 + $0x240] sm:$0xff]
    %v165 = vld [vmem:[#allocation2 + $0x248] sm:$0xff]
    %v166 = vld [vmem:[#allocation2 + $0x250] sm:$0xff]
    %v167 = vld [vmem:[#allocation2 + $0x258] sm:$0xff]
    %v168 = vld [vmem:[#allocation2 + $0x260] sm:$0xff]
    %v169 = vld [vmem:[#allocation2 + $0x268] sm:$0xff]
    %v170 = vld [vmem:[#allocation2 + $0x270] sm:$0xff]
    %v171 = vld [vmem:[#allocation2 + $0x278] sm:$0xff]
    %v172 = vld [vmem:[#allocation2 + $0x280] sm:$0xff]
    %v173 = vld [vmem:[#allocation2 + $0x288] sm:$0xff]
    %v174 = vld [vmem:[#allocation2 + $0x290] sm:$0xff]
    %v175 = vld [vmem:[#allocation2 + $0x298] sm:$0xff]
    %v176 = vld [vmem:[#allocation2 + $0x2a0] sm:$0xff]
    %v177 = vld [vmem:[#allocation2 + $0x2a8] sm:$0xff]
    %v178 = vld [vmem:[#allocation2 + $0x2b0] sm:$0xff]
    %v179 = vld [vmem:[#allocation2 + $0x2b8] sm:$0xff]
    %v180 = vld [vmem:[#allocation2 + $0x2c0] sm:$0xff]
    %v181 = vld [vmem:[#allocation2 + $0x2c8] sm:$0xff]
    %v182 = vld [vmem:[#allocation2 + $0x2d0] sm:$0xff]
    %v183 = vld [vmem:[#allocation2 + $0x2d8] sm:$0xff]
    %v184 = vld [vmem:[#allocation2 + $0x2e0] sm:$0xff]
    %v185 = vld [vmem:[#allocation2 + $0x2e8] sm:$0xff]
    %v186 = vld [vmem:[#allocation2 + $0x2f0] sm:$0xff]
    %v187 = vld [vmem:[#allocation2 + $0x2f8] sm:$0xff]
    %v188 = vld [vmem:[#allocation2 + $0x300] sm:$0xff]
    %v189 = vld [vmem:[#allocation2 + $0x308] sm:$0xff]
    %v190 = vld [vmem:[#allocation2 + $0x310] sm:$0xff]
    %v191 = vld [vmem:[#allocation2 + $0x318] sm:$0xff]
    %v192 = vld [vmem:[#allocation2 + $0x320] sm:$0xff]
    %v193 = vld [vmem:[#allocation2 + $0x328] sm:$0xff]
    %v194 = vld [vmem:[#allocation2 + $0x330] sm:$0xff]
    %v195 = vld [vmem:[#allocation2 + $0x338] sm:$0xff]
    %v196 = vld [vmem:[#allocation2 + $0x340] sm:$0xff]
    %v197 = vld [vmem:[#allocation2 + $0x348] sm:$0xff]
    %v198 = vld [vmem:[#allocation2 + $0x350] sm:$0xff]
    %v199 = vld [vmem:[#allocation2 + $0x358] sm:$0xff]
    %v200 = vld [vmem:[#allocation2 + $0x360] sm:$0xff]
    %v201 = vld [vmem:[#allocation2 + $0x368] sm:$0xff]
    %v202 = vld [vmem:[#allocation2 + $0x370] sm:$0xff]
    %v203 = vld [vmem:[#allocation2 + $0x378] sm:$0xff]
    %v204 = vld [vmem:[#allocation2 + $0x380] sm:$0xff]
    %v205 = vld [vmem:[#allocation2 + $0x388] sm:$0xff]
    %v206 = vld [vmem:[#allocation2 + $0x390] sm:$0xff]
    %v207 = vld [vmem:[#allocation2 + $0x398] sm:$0xff]
    %v208 = vld [vmem:[#allocation2 + $0x3a0] sm:$0xff]
    %v209 = vld [vmem:[#allocation2 + $0x3a8] sm:$0xff]
    %v210 = vld [vmem:[#allocation2 + $0x3b0] sm:$0xff]
    %v211 = vld [vmem:[#allocation2 + $0x3b8] sm:$0xff]
    %v212 = vld [vmem:[#allocation2 + $0x3c0] sm:$0xff]
    %v213 = vld [vmem:[#allocation2 + $0x3c8] sm:$0xff]
    %v214 = vld [vmem:[#allocation2 + $0x3d0] sm:$0xff]
    %v215 = vld [vmem:[#allocation2 + $0x3d8] sm:$0xff]
    %v216 = vld [vmem:[#allocation2 + $0x3e0] sm:$0xff]
    %v217 = vld [vmem:[#allocation2 + $0x3e8] sm:$0xff]
    %v218 = vld [vmem:[#allocation2 + $0x3f0] sm:$0xff]
    %v219 = vld [vmem:[#allocation2 + $0x3f8] sm:$0xff]
    %v220 = vld [vmem:[#allocation2 + $0x400] sm:$0xff]
    %v221 = vld [vmem:[#allocation2 + $0x408] sm:$0xff]
    %v222 = vld [vmem:[#allocation2 + $0x410] sm:$0xff]
    %v223 = vld [vmem:[#allocation2 + $0x418] sm:$0xff]
    %v224 = vld [vmem:[#allocation2 + $0x420] sm:$0xff]
    %v225 = vld [vmem:[#allocation2 + $0x428] sm:$0xff]
    %v226 = vld [vmem:[#allocation2 + $0x430] sm:$0xff]
    %v227 = vld [vmem:[#allocation2 + $0x438] sm:$0xff]
    %v228 = vld [vmem:[#allocation2 + $0x440] sm:$0xff]
    %v229 = vld [vmem:[#allocation2 + $0x448] sm:$0xff]
    %v230 = vld [vmem:[#allocation2 + $0x450] sm:$0xff]
    %v231 = vld [vmem:[#allocation2 + $0x458] sm:$0xff]
    %v232 = vld [vmem:[#allocation2 + $0x460] sm:$0xff]
    %v233 = vld [vmem:[#allocation2 + $0x468] sm:$0xff]
    %v234 = vld [vmem:[#allocation2 + $0x470] sm:$0xff]
    %v235 = vld [vmem:[#allocation2 + $0x478] sm:$0xff]
    %v236 = vld [vmem:[#allocation2 + $0x480] sm:$0xff]
    %v237 = vld [vmem:[#allocation2 + $0x488] sm:$0xff]
    %v238 = vld [vmem:[#allocation2 + $0x490] sm:$0xff]
    %v239 = vld [vmem:[#allocation2 + $0x498] sm:$0xff]
    %v240 = vld [vmem:[#allocation2 + $0x4a0] sm:$0xff]
    %v241 = vld [vmem:[#allocation2 + $0x4a8] sm:$0xff]
    %v242 = vld [vmem:[#allocation2 + $0x4b0] sm:$0xff]
    %v243 = vld [vmem:[#allocation2 + $0x4b8] sm:$0xff]
    %v244 = vld [vmem:[#allocation2 + $0x4c0] sm:$0xff]
    %v245 = vld [vmem:[#allocation2 + $0x4c8] sm:$0xff]
    %v246 = vld [vmem:[#allocation2 + $0x4d0] sm:$0xff]
    %v247 = vld [vmem:[#allocation2 + $0x4d8] sm:$0xff]
    %v248 = vld [vmem:[#allocation2 + $0x4e0] sm:$0xff]
    %v249 = vld [vmem:[#allocation2 + $0x4e8] sm:$0xff]
    %v250 = vld [vmem:[#allocation2 + $0x4f0] sm:$0xff]
    %v251 = vld [vmem:[#allocation2 + $0x4f8] sm:$0xff]
    %v252 = vld [vmem:[#allocation2 + $0x500] sm:$0xff]
    %v253 = vld [vmem:[#allocation2 + $0x508] sm:$0xff]
    %v254 = vld [vmem:[#allocation2 + $0x510] sm:$0xff]
    %v255 = vld [vmem:[#allocation2 + $0x518] sm:$0xff]
    %v256 = vld [vmem:[#allocation2 + $0x520] sm:$0xff]
    %v257 = vld [vmem:[#allocation2 + $0x528] sm:$0xff]
    %v258 = vld [vmem:[#allocation2 + $0x530] sm:$0xff]
    %v259 = vld [vmem:[#allocation2 + $0x538] sm:$0xff]
    %v260 = vld [vmem:[#allocation2 + $0x540] sm:$0xff]
    %v261 = vld [vmem:[#allocation2 + $0x548] sm:$0xff]
    %v262 = vld [vmem:[#allocation2 + $0x550] sm:$0xff]
    %v263 = vld [vmem:[#allocation2 + $0x558] sm:$0xff]
    %v264 = vld [vmem:[#allocation2 + $0x560] sm:$0xff]
    %v265 = vld [vmem:[#allocation2 + $0x568] sm:$0xff]
    %v266 = vld [vmem:[#allocation2 + $0x570] sm:$0xff]
    %v267 = vld [vmem:[#allocation2 + $0x578] sm:$0xff]
    %v268 = vld [vmem:[#allocation2 + $0x580] sm:$0xff]
    %v269 = vld [vmem:[#allocation2 + $0x588] sm:$0xff]
    %v270 = vld [vmem:[#allocation2 + $0x590] sm:$0xff]
    %v271 = vld [vmem:[#allocation2 + $0x598] sm:$0xff]
    %v272 = vld [vmem:[#allocation2 + $0x5a0] sm:$0xff]
    %v273 = vld [vmem:[#allocation2 + $0x5a8] sm:$0xff]
    %v274 = vld [vmem:[#allocation2 + $0x5b0] sm:$0xff]
    %v275 = vld [vmem:[#allocation2 + $0x5b8] sm:$0xff]
    %v276 = vld [vmem:[#allocation2 + $0x5c0] sm:$0xff]
    %v277 = vld [vmem:[#allocation2 + $0x5c8] sm:$0xff]
    %v278 = vld [vmem:[#allocation2 + $0x5d0] sm:$0xff]
    %v279 = vld [vmem:[#allocation2 + $0x5d8] sm:$0xff]
    %v280 = vld [vmem:[#allocation2 + $0x5e0] sm:$0xff]
    %v281 = vld [vmem:[#allocation2 + $0x5e8] sm:$0xff]
    %v282 = vld [vmem:[#allocation2 + $0x5f0] sm:$0xff]
    %v283 = vld [vmem:[#allocation2 + $0x5f8] sm:$0xff]
    %v284 = vld [vmem:[#allocation2 + $0x600] sm:$0xff]
    %v285 = vld [vmem:[#allocation2 + $0x608] sm:$0xff]
    %v286 = vld [vmem:[#allocation2 + $0x610] sm:$0xff]
    %v287 = vld [vmem:[#allocation2 + $0x618] sm:$0xff]
    %v288 = vld [vmem:[#allocation2 + $0x620] sm:$0xff]
    %v289 = vld [vmem:[#allocation2 + $0x628] sm:$0xff]
    %v290 = vld [vmem:[#allocation2 + $0x630] sm:$0xff]
    %v291 = vld [vmem:[#allocation2 + $0x638] sm:$0xff]
    %v292 = vld [vmem:[#allocation2 + $0x640] sm:$0xff]
    %v293 = vld [vmem:[#allocation2 + $0x648] sm:$0xff]
    %v294 = vld [vmem:[#allocation2 + $0x650] sm:$0xff]
    %v295 = vld [vmem:[#allocation2 + $0x658] sm:$0xff]
    %v296 = vld [vmem:[#allocation2 + $0x660] sm:$0xff]
    %v297 = vld [vmem:[#allocation2 + $0x668] sm:$0xff]
    %v298 = vld [vmem:[#allocation2 + $0x670] sm:$0xff]
    %v299 = vld [vmem:[#allocation2 + $0x678] sm:$0xff]
    %v300 = vld [vmem:[#allocation2 + $0x680] sm:$0xff]
    %v301 = vld [vmem:[#allocation2 + $0x688] sm:$0xff]
    %v302 = vld [vmem:[#allocation2 + $0x690] sm:$0xff]
    %v303 = vld [vmem:[#allocation2 + $0x698] sm:$0xff]
    %v304 = vld [vmem:[#allocation2 + $0x6a0] sm:$0xff]
    %v305 = vld [vmem:[#allocation2 + $0x6a8] sm:$0xff]
    %v306 = vld [vmem:[#allocation2 + $0x6b0] sm:$0xff]
    %v307 = vld [vmem:[#allocation2 + $0x6b8] sm:$0xff]
    %v308 = vld [vmem:[#allocation2 + $0x6c0] sm:$0xff]
    %v309 = vld [vmem:[#allocation2 + $0x6c8] sm:$0xff]
    %v310 = vld [vmem:[#allocation2 + $0x6d0] sm:$0xff]
    %v311 = vld [vmem:[#allocation2 + $0x6d8] sm:$0xff]
    %v312 = vld [vmem:[#allocation2 + $0x6e0] sm:$0xff]
    %v313 = vld [vmem:[#allocation2 + $0x6e8] sm:$0xff]
    %v314 = vld [vmem:[#allocation2 + $0x6f0] sm:$0xff]
    %v315 = vld [vmem:[#allocation2 + $0x6f8] sm:$0xff]
    %v316 = vld [vmem:[#allocation2 + $0x700] sm:$0xff]
    %v317 = vld [vmem:[#allocation2 + $0x708] sm:$0xff]
    %v318 = vld [vmem:[#allocation2 + $0x710] sm:$0xff]
    %v319 = vld [vmem:[#allocation2 + $0x718] sm:$0xff]
    %v320 = vld [vmem:[#allocation2 + $0x720] sm:$0xff]
    %v321 = vld [vmem:[#allocation2 + $0x728] sm:$0xff]
    %v322 = vld [vmem:[#allocation2 + $0x730] sm:$0xff]
    %v323 = vld [vmem:[#allocation2 + $0x738] sm:$0xff]
    %v324 = vld [vmem:[#allocation2 + $0x740] sm:$0xff]
    %v325 = vld [vmem:[#allocation2 + $0x748] sm:$0xff]
    %v326 = vld [vmem:[#allocation2 + $0x750] sm:$0xff]
    %v327 = vld [vmem:[#allocation2 + $0x758] sm:$0xff]
    %v328 = vld [vmem:[#allocation2 + $0x760] sm:$0xff]
    %v329 = vld [vmem:[#allocation2 + $0x768] sm:$0xff]
    %v330 = vld [vmem:[#allocation2 + $0x770] sm:$0xff]
    %v331 = vld [vmem:[#allocation2 + $0x778] sm:$0xff]
    %v332 = vld [vmem:[#allocation2 + $0x780] sm:$0xff]
    %v333 = vld [vmem:[#allocation2 + $0x788] sm:$0xff]
    %v334 = vld [vmem:[#allocation2 + $0x790] sm:$0xff]
    %v335 = vld [vmem:[#allocation2 + $0x798] sm:$0xff]
    %v336 = vld [vmem:[#allocation2 + $0x7a0] sm:$0xff]
    %v337 = vld [vmem:[#allocation2 + $0x7a8] sm:$0xff]
    %v338 = vld [vmem:[#allocation2 + $0x7b0] sm:$0xff]
    %v339 = vld [vmem:[#allocation2 + $0x7b8] sm:$0xff]
    %v340 = vld [vmem:[#allocation2 + $0x7c0] sm:$0xff]
    %v341 = vld [vmem:[#allocation2 + $0x7c8] sm:$0xff]
    %v342 = vld [vmem:[#allocation2 + $0x7d0] sm:$0xff]
    %v343 = vld [vmem:[#allocation2 + $0x7d8] sm:$0xff]
    %v344 = vld [vmem:[#allocation2 + $0x7e0] sm:$0xff]
    %v345 = vld [vmem:[#allocation2 + $0x7e8] sm:$0xff]
    %v346 = vld [vmem:[#allocation2 + $0x7f0] sm:$0xff]
    %v347 = vld [vmem:[#allocation2 + $0x7f8] sm:$0xff]
    %349 = vset.pattern.permute.xlu0 0
    %350 = vperm.xlu0 %349, %v60
    %v351 = vpop.permute.xlu0 %350
    %354 = vset.pattern.permute.xlu0 0
    %355 = vperm.xlu0 %354, %v61
    %v356 = vpop.permute.xlu0 %355
    %359 = vset.pattern.permute.xlu0 0
    %360 = vperm.xlu0 %359, %v62
    %v361 = vpop.permute.xlu0 %360
    %364 = vset.pattern.permute.xlu0 0
    %365 = vperm.xlu0 %364, %v63
    %v366 = vpop.permute.xlu0 %365
    %369 = vset.pattern.permute.xlu0 0
    %370 = vperm.xlu0 %369, %v64
    %v371 = vpop.permute.xlu0 %370
    %374 = vset.pattern.permute.xlu0 0
    %375 = vperm.xlu0 %374, %v65
    %v376 = vpop.permute.xlu0 %375
    %379 = vset.pattern.permute.xlu0 0
    %380 = vperm.xlu0 %379, %v66
    %v381 = vpop.permute.xlu0 %380
    %384 = vset.pattern.permute.xlu0 0
    %385 = vperm.xlu0 %384, %v67
    %v386 = vpop.permute.xlu0 %385
    %389 = vset.pattern.permute.xlu0 0
    %390 = vperm.xlu0 %389, %v68
    %v391 = vpop.permute.xlu0 %390
    %394 = vset.pattern.permute.xlu0 0
    %395 = vperm.xlu0 %394, %v69
    %v396 = vpop.permute.xlu0 %395
    %399 = vset.pattern.permute.xlu0 0
    %400 = vperm.xlu0 %399, %v70
    %v401 = vpop.permute.xlu0 %400
    %404 = vset.pattern.permute.xlu0 0
    %405 = vperm.xlu0 %404, %v71
    %v406 = vpop.permute.xlu0 %405
    %409 = vset.pattern.permute.xlu0 0
    %410 = vperm.xlu0 %409, %v72
    %v411 = vpop.permute.xlu0 %410
    %414 = vset.pattern.permute.xlu0 0
    %415 = vperm.xlu0 %414, %v73
    %v416 = vpop.permute.xlu0 %415
    %419 = vset.pattern.permute.xlu0 0
    %420 = vperm.xlu0 %419, %v74
    %v421 = vpop.permute.xlu0 %420
    %424 = vset.pattern.permute.xlu0 0
    %425 = vperm.xlu0 %424, %v75
    %v426 = vpop.permute.xlu0 %425
    %429 = vset.pattern.permute.xlu0 0
    %430 = vperm.xlu0 %429, %v76
    %v431 = vpop.permute.xlu0 %430
    %434 = vset.pattern.permute.xlu0 0
    %435 = vperm.xlu0 %434, %v77
    %v436 = vpop.permute.xlu0 %435
    %439 = vset.pattern.permute.xlu0 0
    %440 = vperm.xlu0 %439, %v78
    %v441 = vpop.permute.xlu0 %440
    %444 = vset.pattern.permute.xlu0 0
    %445 = vperm.xlu0 %444, %v79
    %v446 = vpop.permute.xlu0 %445
    %449 = vset.pattern.permute.xlu0 0
    %450 = vperm.xlu0 %449, %v80
    %v451 = vpop.permute.xlu0 %450
    %454 = vset.pattern.permute.xlu0 0
    %455 = vperm.xlu0 %454, %v81
    %v456 = vpop.permute.xlu0 %455
    %459 = vset.pattern.permute.xlu0 0
    %460 = vperm.xlu0 %459, %v82
    %v461 = vpop.permute.xlu0 %460
    %464 = vset.pattern.permute.xlu0 0
    %465 = vperm.xlu0 %464, %v83
    %v466 = vpop.permute.xlu0 %465
    %469 = vset.pattern.permute.xlu0 0
    %470 = vperm.xlu0 %469, %v84
    %v471 = vpop.permute.xlu0 %470
    %474 = vset.pattern.permute.xlu0 0
    %475 = vperm.xlu0 %474, %v85
    %v476 = vpop.permute.xlu0 %475
    %479 = vset.pattern.permute.xlu0 0
    %480 = vperm.xlu0 %479, %v86
    %v481 = vpop.permute.xlu0 %480
    %484 = vset.pattern.permute.xlu0 0
    %485 = vperm.xlu0 %484, %v87
    %v486 = vpop.permute.xlu0 %485
    %489 = vset.pattern.permute.xlu0 0
    %490 = vperm.xlu0 %489, %v88
    %v491 = vpop.permute.xlu0 %490
    %494 = vset.pattern.permute.xlu0 0
    %495 = vperm.xlu0 %494, %v89
    %v496 = vpop.permute.xlu0 %495
    %499 = vset.pattern.permute.xlu0 0
    %500 = vperm.xlu0 %499, %v90
    %v501 = vpop.permute.xlu0 %500
    %504 = vset.pattern.permute.xlu0 0
    %505 = vperm.xlu0 %504, %v91
    %v506 = vpop.permute.xlu0 %505
    %v508 = vmul.f32 %v92, %v351
    %v509 = vmul.f32 %v93, %v351
    %v510 = vmul.f32 %v94, %v351
    %v511 = vmul.f32 %v95, %v351
    %v512 = vmul.f32 %v96, %v351
    %v513 = vmul.f32 %v97, %v351
    %v514 = vmul.f32 %v98, %v351
    %v515 = vmul.f32 %v99, %v351
    %v516 = vmul.f32 %v100, %v356
    %v517 = vmul.f32 %v101, %v356
    %v518 = vmul.f32 %v102, %v356
    %v519 = vmul.f32 %v103, %v356
    %v520 = vmul.f32 %v104, %v356
    %v521 = vmul.f32 %v105, %v356
    %v522 = vmul.f32 %v106, %v356
    %v523 = vmul.f32 %v107, %v356
    %v524 = vmul.f32 %v108, %v361
    %v525 = vmul.f32 %v109, %v361
    %v526 = vmul.f32 %v110, %v361
    %v527 = vmul.f32 %v111, %v361
    %v528 = vmul.f32 %v112, %v361
    %v529 = vmul.f32 %v113, %v361
    %v530 = vmul.f32 %v114, %v361
    %v531 = vmul.f32 %v115, %v361
    %v532 = vmul.f32 %v116, %v366
    %v533 = vmul.f32 %v117, %v366
    %v534 = vmul.f32 %v118, %v366
    %v535 = vmul.f32 %v119, %v366
    %v536 = vmul.f32 %v120, %v366
    %v537 = vmul.f32 %v121, %v366
    %v538 = vmul.f32 %v122, %v366
    %v539 = vmul.f32 %v123, %v366
    %v540 = vmul.f32 %v124, %v371
    %v541 = vmul.f32 %v125, %v371
    %v542 = vmul.f32 %v126, %v371
    %v543 = vmul.f32 %v127, %v371
    %v544 = vmul.f32 %v128, %v371
    %v545 = vmul.f32 %v129, %v371
    %v546 = vmul.f32 %v130, %v371
    %v547 = vmul.f32 %v131, %v371
    %v548 = vmul.f32 %v132, %v376
    %v549 = vmul.f32 %v133, %v376
    %v550 = vmul.f32 %v134, %v376
    %v551 = vmul.f32 %v135, %v376
    %v552 = vmul.f32 %v136, %v376
    %v553 = vmul.f32 %v137, %v376
    %v554 = vmul.f32 %v138, %v376
    %v555 = vmul.f32 %v139, %v376
    %v556 = vmul.f32 %v140, %v381
    %v557 = vmul.f32 %v141, %v381
    %v558 = vmul.f32 %v142, %v381
    %v559 = vmul.f32 %v143, %v381
    %v560 = vmul.f32 %v144, %v381
    %v561 = vmul.f32 %v145, %v381
    %v562 = vmul.f32 %v146, %v381
    %v563 = vmul.f32 %v147, %v381
    %v564 = vmul.f32 %v148, %v386
    %v565 = vmul.f32 %v149, %v386
    %v566 = vmul.f32 %v150, %v386
    %v567 = vmul.f32 %v151, %v386
    %v568 = vmul.f32 %v152, %v386
    %v569 = vmul.f32 %v153, %v386
    %v570 = vmul.f32 %v154, %v386
    %v571 = vmul.f32 %v155, %v386
    %v572 = vmul.f32 %v156, %v391
    %v573 = vmul.f32 %v157, %v391
    %v574 = vmul.f32 %v158, %v391
    %v575 = vmul.f32 %v159, %v391
    %v576 = vmul.f32 %v160, %v391
    %v577 = vmul.f32 %v161, %v391
    %v578 = vmul.f32 %v162, %v391
    %v579 = vmul.f32 %v163, %v391
    %v580 = vmul.f32 %v164, %v396
    %v581 = vmul.f32 %v165, %v396
    %v582 = vmul.f32 %v166, %v396
    %v583 = vmul.f32 %v167, %v396
    %v584 = vmul.f32 %v168, %v396
    %v585 = vmul.f32 %v169, %v396
    %v586 = vmul.f32 %v170, %v396
    %v587 = vmul.f32 %v171, %v396
    %v588 = vmul.f32 %v172, %v401
    %v589 = vmul.f32 %v173, %v401
    %v590 = vmul.f32 %v174, %v401
    %v591 = vmul.f32 %v175, %v401
    %v592 = vmul.f32 %v176, %v401
    %v593 = vmul.f32 %v177, %v401
    %v594 = vmul.f32 %v178, %v401
    %v595 = vmul.f32 %v179, %v401
    %v596 = vmul.f32 %v180, %v406
    %v597 = vmul.f32 %v181, %v406
    %v598 = vmul.f32 %v182, %v406
    %v599 = vmul.f32 %v183, %v406
    %v600 = vmul.f32 %v184, %v406
    %v601 = vmul.f32 %v185, %v406
    %v602 = vmul.f32 %v186, %v406
    %v603 = vmul.f32 %v187, %v406
    %v604 = vmul.f32 %v188, %v411
    %v605 = vmul.f32 %v189, %v411
    %v606 = vmul.f32 %v190, %v411
    %v607 = vmul.f32 %v191, %v411
    %v608 = vmul.f32 %v192, %v411
    %v609 = vmul.f32 %v193, %v411
    %v610 = vmul.f32 %v194, %v411
    %v611 = vmul.f32 %v195, %v411
    %v612 = vmul.f32 %v196, %v416
    %v613 = vmul.f32 %v197, %v416
    %v614 = vmul.f32 %v198, %v416
    %v615 = vmul.f32 %v199, %v416
    %v616 = vmul.f32 %v200, %v416
    %v617 = vmul.f32 %v201, %v416
    %v618 = vmul.f32 %v202, %v416
    %v619 = vmul.f32 %v203, %v416
    %v620 = vmul.f32 %v204, %v421
    %v621 = vmul.f32 %v205, %v421
    %v622 = vmul.f32 %v206, %v421
    %v623 = vmul.f32 %v207, %v421
    %v624 = vmul.f32 %v208, %v421
    %v625 = vmul.f32 %v209, %v421
    %v626 = vmul.f32 %v210, %v421
    %v627 = vmul.f32 %v211, %v421
    %v628 = vmul.f32 %v212, %v426
    %v629 = vmul.f32 %v213, %v426
    %v630 = vmul.f32 %v214, %v426
    %v631 = vmul.f32 %v215, %v426
    %v632 = vmul.f32 %v216, %v426
    %v633 = vmul.f32 %v217, %v426
    %v634 = vmul.f32 %v218, %v426
    %v635 = vmul.f32 %v219, %v426
    %v636 = vmul.f32 %v220, %v431
    %v637 = vmul.f32 %v221, %v431
    %v638 = vmul.f32 %v222, %v431
    %v639 = vmul.f32 %v223, %v431
    %v640 = vmul.f32 %v224, %v431
    %v641 = vmul.f32 %v225, %v431
    %v642 = vmul.f32 %v226, %v431
    %v643 = vmul.f32 %v227, %v431
    %v644 = vmul.f32 %v228, %v436
    %v645 = vmul.f32 %v229, %v436
    %v646 = vmul.f32 %v230, %v436
    %v647 = vmul.f32 %v231, %v436
    %v648 = vmul.f32 %v232, %v436
    %v649 = vmul.f32 %v233, %v436
    %v650 = vmul.f32 %v234, %v436
    %v651 = vmul.f32 %v235, %v436
    %v652 = vmul.f32 %v236, %v441
    %v653 = vmul.f32 %v237, %v441
    %v654 = vmul.f32 %v238, %v441
    %v655 = vmul.f32 %v239, %v441
    %v656 = vmul.f32 %v240, %v441
    %v657 = vmul.f32 %v241, %v441
    %v658 = vmul.f32 %v242, %v441
    %v659 = vmul.f32 %v243, %v441
    %v660 = vmul.f32 %v244, %v446
    %v661 = vmul.f32 %v245, %v446
    %v662 = vmul.f32 %v246, %v446
    %v663 = vmul.f32 %v247, %v446
    %v664 = vmul.f32 %v248, %v446
    %v665 = vmul.f32 %v249, %v446
    %v666 = vmul.f32 %v250, %v446
    %v667 = vmul.f32 %v251, %v446
    %v668 = vmul.f32 %v252, %v451
    %v669 = vmul.f32 %v253, %v451
    %v670 = vmul.f32 %v254, %v451
    %v671 = vmul.f32 %v255, %v451
    %v672 = vmul.f32 %v256, %v451
    %v673 = vmul.f32 %v257, %v451
    %v674 = vmul.f32 %v258, %v451
    %v675 = vmul.f32 %v259, %v451
    %v676 = vmul.f32 %v260, %v456
    %v677 = vmul.f32 %v261, %v456
    %v678 = vmul.f32 %v262, %v456
    %v679 = vmul.f32 %v263, %v456
    %v680 = vmul.f32 %v264, %v456
    %v681 = vmul.f32 %v265, %v456
    %v682 = vmul.f32 %v266, %v456
    %v683 = vmul.f32 %v267, %v456
    %v684 = vmul.f32 %v268, %v461
    %v685 = vmul.f32 %v269, %v461
    %v686 = vmul.f32 %v270, %v461
    %v687 = vmul.f32 %v271, %v461
    %v688 = vmul.f32 %v272, %v461
    %v689 = vmul.f32 %v273, %v461
    %v690 = vmul.f32 %v274, %v461
    %v691 = vmul.f32 %v275, %v461
    %v692 = vmul.f32 %v276, %v466
    %v693 = vmul.f32 %v277, %v466
    %v694 = vmul.f32 %v278, %v466
    %v695 = vmul.f32 %v279, %v466
    %v696 = vmul.f32 %v280, %v466
    %v697 = vmul.f32 %v281, %v466
    %v698 = vmul.f32 %v282, %v466
    %v699 = vmul.f32 %v283, %v466
    %v700 = vmul.f32 %v284, %v471
    %v701 = vmul.f32 %v285, %v471
    %v702 = vmul.f32 %v286, %v471
    %v703 = vmul.f32 %v287, %v471
    %v704 = vmul.f32 %v288, %v471
    %v705 = vmul.f32 %v289, %v471
    %v706 = vmul.f32 %v290, %v471
    %v707 = vmul.f32 %v291, %v471
    %v708 = vmul.f32 %v292, %v476
    %v709 = vmul.f32 %v293, %v476
    %v710 = vmul.f32 %v294, %v476
    %v711 = vmul.f32 %v295, %v476
    %v712 = vmul.f32 %v296, %v476
    %v713 = vmul.f32 %v297, %v476
    %v714 = vmul.f32 %v298, %v476
    %v715 = vmul.f32 %v299, %v476
    %v716 = vmul.f32 %v300, %v481
    %v717 = vmul.f32 %v301, %v481
    %v718 = vmul.f32 %v302, %v481
    %v719 = vmul.f32 %v303, %v481
    %v720 = vmul.f32 %v304, %v481
    %v721 = vmul.f32 %v305, %v481
    %v722 = vmul.f32 %v306, %v481
    %v723 = vmul.f32 %v307, %v481
    %v724 = vmul.f32 %v308, %v486
    %v725 = vmul.f32 %v309, %v486
    %v726 = vmul.f32 %v310, %v486
    %v727 = vmul.f32 %v311, %v486
    %v728 = vmul.f32 %v312, %v486
    %v729 = vmul.f32 %v313, %v486
    %v730 = vmul.f32 %v314, %v486
    %v731 = vmul.f32 %v315, %v486
    %v732 = vmul.f32 %v316, %v491
    %v733 = vmul.f32 %v317, %v491
    %v734 = vmul.f32 %v318, %v491
    %v735 = vmul.f32 %v319, %v491
    %v736 = vmul.f32 %v320, %v491
    %v737 = vmul.f32 %v321, %v491
    %v738 = vmul.f32 %v322, %v491
    %v739 = vmul.f32 %v323, %v491
    %v740 = vmul.f32 %v324, %v496
    %v741 = vmul.f32 %v325, %v496
    %v742 = vmul.f32 %v326, %v496
    %v743 = vmul.f32 %v327, %v496
    %v744 = vmul.f32 %v328, %v496
    %v745 = vmul.f32 %v329, %v496
    %v746 = vmul.f32 %v330, %v496
    %v747 = vmul.f32 %v331, %v496
    %v748 = vmul.f32 %v332, %v501
    %v749 = vmul.f32 %v333, %v501
    %v750 = vmul.f32 %v334, %v501
    %v751 = vmul.f32 %v335, %v501
    %v752 = vmul.f32 %v336, %v501
    %v753 = vmul.f32 %v337, %v501
    %v754 = vmul.f32 %v338, %v501
    %v755 = vmul.f32 %v339, %v501
    %v756 = vmul.f32 %v340, %v506
    %v757 = vmul.f32 %v341, %v506
    %v758 = vmul.f32 %v342, %v506
    %v759 = vmul.f32 %v343, %v506
    %v760 = vmul.f32 %v344, %v506
    %v761 = vmul.f32 %v345, %v506
    %v762 = vmul.f32 %v346, %v506
    %v763 = vmul.f32 %v347, %v506
    %764 = vst [vmem:[#allocation5] sm:$0xff] %v508
    %765 = vst [vmem:[#allocation5 + $0x8] sm:$0xff] %v509
    %766 = vst [vmem:[#allocation5 + $0x10] sm:$0xff] %v510
    %767 = vst [vmem:[#allocation5 + $0x18] sm:$0xff] %v511
    %768 = vst [vmem:[#allocation5 + $0x20] sm:$0xff] %v512
    %769 = vst [vmem:[#allocation5 + $0x28] sm:$0xff] %v513
    %770 = vst [vmem:[#allocation5 + $0x30] sm:$0xff] %v514
    %771 = vst [vmem:[#allocation5 + $0x38] sm:$0xff] %v515
    %772 = vst [vmem:[#allocation5 + $0x40] sm:$0xff] %v516
    %773 = vst [vmem:[#allocation5 + $0x48] sm:$0xff] %v517
    %774 = vst [vmem:[#allocation5 + $0x50] sm:$0xff] %v518
    %775 = vst [vmem:[#allocation5 + $0x58] sm:$0xff] %v519
    %776 = vst [vmem:[#allocation5 + $0x60] sm:$0xff] %v520
    %777 = vst [vmem:[#allocation5 + $0x68] sm:$0xff] %v521
    %778 = vst [vmem:[#allocation5 + $0x70] sm:$0xff] %v522
    %779 = vst [vmem:[#allocation5 + $0x78] sm:$0xff] %v523
    %780 = vst [vmem:[#allocation5 + $0x80] sm:$0xff] %v524
    %781 = vst [vmem:[#allocation5 + $0x88] sm:$0xff] %v525
    %782 = vst [vmem:[#allocation5 + $0x90] sm:$0xff] %v526
    %783 = vst [vmem:[#allocation5 + $0x98] sm:$0xff] %v527
    %784 = vst [vmem:[#allocation5 + $0xa0] sm:$0xff] %v528
    %785 = vst [vmem:[#allocation5 + $0xa8] sm:$0xff] %v529
    %786 = vst [vmem:[#allocation5 + $0xb0] sm:$0xff] %v530
    %787 = vst [vmem:[#allocation5 + $0xb8] sm:$0xff] %v531
    %788 = vst [vmem:[#allocation5 + $0xc0] sm:$0xff] %v532
    %789 = vst [vmem:[#allocation5 + $0xc8] sm:$0xff] %v533
    %790 = vst [vmem:[#allocation5 + $0xd0] sm:$0xff] %v534
    %791 = vst [vmem:[#allocation5 + $0xd8] sm:$0xff] %v535
    %792 = vst [vmem:[#allocation5 + $0xe0] sm:$0xff] %v536
    %793 = vst [vmem:[#allocation5 + $0xe8] sm:$0xff] %v537
    %794 = vst [vmem:[#allocation5 + $0xf0] sm:$0xff] %v538
    %795 = vst [vmem:[#allocation5 + $0xf8] sm:$0xff] %v539
    %796 = vst [vmem:[#allocation5 + $0x100] sm:$0xff] %v540
    %797 = vst [vmem:[#allocation5 + $0x108] sm:$0xff] %v541
    %798 = vst [vmem:[#allocation5 + $0x110] sm:$0xff] %v542
    %799 = vst [vmem:[#allocation5 + $0x118] sm:$0xff] %v543
    %800 = vst [vmem:[#allocation5 + $0x120] sm:$0xff] %v544
    %801 = vst [vmem:[#allocation5 + $0x128] sm:$0xff] %v545
    %802 = vst [vmem:[#allocation5 + $0x130] sm:$0xff] %v546
    %803 = vst [vmem:[#allocation5 + $0x138] sm:$0xff] %v547
    %804 = vst [vmem:[#allocation5 + $0x140] sm:$0xff] %v548
    %805 = vst [vmem:[#allocation5 + $0x148] sm:$0xff] %v549
    %806 = vst [vmem:[#allocation5 + $0x150] sm:$0xff] %v550
    %807 = vst [vmem:[#allocation5 + $0x158] sm:$0xff] %v551
    %808 = vst [vmem:[#allocation5 + $0x160] sm:$0xff] %v552
    %809 = vst [vmem:[#allocation5 + $0x168] sm:$0xff] %v553
    %810 = vst [vmem:[#allocation5 + $0x170] sm:$0xff] %v554
    %811 = vst [vmem:[#allocation5 + $0x178] sm:$0xff] %v555
    %812 = vst [vmem:[#allocation5 + $0x180] sm:$0xff] %v556
    %813 = vst [vmem:[#allocation5 + $0x188] sm:$0xff] %v557
    %814 = vst [vmem:[#allocation5 + $0x190] sm:$0xff] %v558
    %815 = vst [vmem:[#allocation5 + $0x198] sm:$0xff] %v559
    %816 = vst [vmem:[#allocation5 + $0x1a0] sm:$0xff] %v560
    %817 = vst [vmem:[#allocation5 + $0x1a8] sm:$0xff] %v561
    %818 = vst [vmem:[#allocation5 + $0x1b0] sm:$0xff] %v562
    %819 = vst [vmem:[#allocation5 + $0x1b8] sm:$0xff] %v563
    %820 = vst [vmem:[#allocation5 + $0x1c0] sm:$0xff] %v564
    %821 = vst [vmem:[#allocation5 + $0x1c8] sm:$0xff] %v565
    %822 = vst [vmem:[#allocation5 + $0x1d0] sm:$0xff] %v566
    %823 = vst [vmem:[#allocation5 + $0x1d8] sm:$0xff] %v567
    %824 = vst [vmem:[#allocation5 + $0x1e0] sm:$0xff] %v568
    %825 = vst [vmem:[#allocation5 + $0x1e8] sm:$0xff] %v569
    %826 = vst [vmem:[#allocation5 + $0x1f0] sm:$0xff] %v570
    %827 = vst [vmem:[#allocation5 + $0x1f8] sm:$0xff] %v571
    %828 = vst [vmem:[#allocation5 + $0x200] sm:$0xff] %v572
    %829 = vst [vmem:[#allocation5 + $0x208] sm:$0xff] %v573
    %830 = vst [vmem:[#allocation5 + $0x210] sm:$0xff] %v574
    %831 = vst [vmem:[#allocation5 + $0x218] sm:$0xff] %v575
    %832 = vst [vmem:[#allocation5 + $0x220] sm:$0xff] %v576
    %833 = vst [vmem:[#allocation5 + $0x228] sm:$0xff] %v577
    %834 = vst [vmem:[#allocation5 + $0x230] sm:$0xff] %v578
    %835 = vst [vmem:[#allocation5 + $0x238] sm:$0xff] %v579
    %836 = vst [vmem:[#allocation5 + $0x240] sm:$0xff] %v580
    %837 = vst [vmem:[#allocation5 + $0x248] sm:$0xff] %v581
    %838 = vst [vmem:[#allocation5 + $0x250] sm:$0xff] %v582
    %839 = vst [vmem:[#allocation5 + $0x258] sm:$0xff] %v583
    %840 = vst [vmem:[#allocation5 + $0x260] sm:$0xff] %v584
    %841 = vst [vmem:[#allocation5 + $0x268] sm:$0xff] %v585
    %842 = vst [vmem:[#allocation5 + $0x270] sm:$0xff] %v586
    %843 = vst [vmem:[#allocation5 + $0x278] sm:$0xff] %v587
    %844 = vst [vmem:[#allocation5 + $0x280] sm:$0xff] %v588
    %845 = vst [vmem:[#allocation5 + $0x288] sm:$0xff] %v589
    %846 = vst [vmem:[#allocation5 + $0x290] sm:$0xff] %v590
    %847 = vst [vmem:[#allocation5 + $0x298] sm:$0xff] %v591
    %848 = vst [vmem:[#allocation5 + $0x2a0] sm:$0xff] %v592
    %849 = vst [vmem:[#allocation5 + $0x2a8] sm:$0xff] %v593
    %850 = vst [vmem:[#allocation5 + $0x2b0] sm:$0xff] %v594
    %851 = vst [vmem:[#allocation5 + $0x2b8] sm:$0xff] %v595
    %852 = vst [vmem:[#allocation5 + $0x2c0] sm:$0xff] %v596
    %853 = vst [vmem:[#allocation5 + $0x2c8] sm:$0xff] %v597
    %854 = vst [vmem:[#allocation5 + $0x2d0] sm:$0xff] %v598
    %855 = vst [vmem:[#allocation5 + $0x2d8] sm:$0xff] %v599
    %856 = vst [vmem:[#allocation5 + $0x2e0] sm:$0xff] %v600
    %857 = vst [vmem:[#allocation5 + $0x2e8] sm:$0xff] %v601
    %858 = vst [vmem:[#allocation5 + $0x2f0] sm:$0xff] %v602
    %859 = vst [vmem:[#allocation5 + $0x2f8] sm:$0xff] %v603
    %860 = vst [vmem:[#allocation5 + $0x300] sm:$0xff] %v604
    %861 = vst [vmem:[#allocation5 + $0x308] sm:$0xff] %v605
    %862 = vst [vmem:[#allocation5 + $0x310] sm:$0xff] %v606
    %863 = vst [vmem:[#allocation5 + $0x318] sm:$0xff] %v607
    %864 = vst [vmem:[#allocation5 + $0x320] sm:$0xff] %v608
    %865 = vst [vmem:[#allocation5 + $0x328] sm:$0xff] %v609
    %866 = vst [vmem:[#allocation5 + $0x330] sm:$0xff] %v610
    %867 = vst [vmem:[#allocation5 + $0x338] sm:$0xff] %v611
    %868 = vst [vmem:[#allocation5 + $0x340] sm:$0xff] %v612
    %869 = vst [vmem:[#allocation5 + $0x348] sm:$0xff] %v613
    %870 = vst [vmem:[#allocation5 + $0x350] sm:$0xff] %v614
    %871 = vst [vmem:[#allocation5 + $0x358] sm:$0xff] %v615
    %872 = vst [vmem:[#allocation5 + $0x360] sm:$0xff] %v616
    %873 = vst [vmem:[#allocation5 + $0x368] sm:$0xff] %v617
    %874 = vst [vmem:[#allocation5 + $0x370] sm:$0xff] %v618
    %875 = vst [vmem:[#allocation5 + $0x378] sm:$0xff] %v619
    %876 = vst [vmem:[#allocation5 + $0x380] sm:$0xff] %v620
    %877 = vst [vmem:[#allocation5 + $0x388] sm:$0xff] %v621
    %878 = vst [vmem:[#allocation5 + $0x390] sm:$0xff] %v622
    %879 = vst [vmem:[#allocation5 + $0x398] sm:$0xff] %v623
    %880 = vst [vmem:[#allocation5 + $0x3a0] sm:$0xff] %v624
    %881 = vst [vmem:[#allocation5 + $0x3a8] sm:$0xff] %v625
    %882 = vst [vmem:[#allocation5 + $0x3b0] sm:$0xff] %v626
    %883 = vst [vmem:[#allocation5 + $0x3b8] sm:$0xff] %v627
    %884 = vst [vmem:[#allocation5 + $0x3c0] sm:$0xff] %v628
    %885 = vst [vmem:[#allocation5 + $0x3c8] sm:$0xff] %v629
    %886 = vst [vmem:[#allocation5 + $0x3d0] sm:$0xff] %v630
    %887 = vst [vmem:[#allocation5 + $0x3d8] sm:$0xff] %v631
    %888 = vst [vmem:[#allocation5 + $0x3e0] sm:$0xff] %v632
    %889 = vst [vmem:[#allocation5 + $0x3e8] sm:$0xff] %v633
    %890 = vst [vmem:[#allocation5 + $0x3f0] sm:$0xff] %v634
    %891 = vst [vmem:[#allocation5 + $0x3f8] sm:$0xff] %v635
    %892 = vst [vmem:[#allocation5 + $0x400] sm:$0xff] %v636
    %893 = vst [vmem:[#allocation5 + $0x408] sm:$0xff] %v637
    %894 = vst [vmem:[#allocation5 + $0x410] sm:$0xff] %v638
    %895 = vst [vmem:[#allocation5 + $0x418] sm:$0xff] %v639
    %896 = vst [vmem:[#allocation5 + $0x420] sm:$0xff] %v640
    %897 = vst [vmem:[#allocation5 + $0x428] sm:$0xff] %v641
    %898 = vst [vmem:[#allocation5 + $0x430] sm:$0xff] %v642
    %899 = vst [vmem:[#allocation5 + $0x438] sm:$0xff] %v643
    %900 = vst [vmem:[#allocation5 + $0x440] sm:$0xff] %v644
    %901 = vst [vmem:[#allocation5 + $0x448] sm:$0xff] %v645
    %902 = vst [vmem:[#allocation5 + $0x450] sm:$0xff] %v646
    %903 = vst [vmem:[#allocation5 + $0x458] sm:$0xff] %v647
    %904 = vst [vmem:[#allocation5 + $0x460] sm:$0xff] %v648
    %905 = vst [vmem:[#allocation5 + $0x468] sm:$0xff] %v649
    %906 = vst [vmem:[#allocation5 + $0x470] sm:$0xff] %v650
    %907 = vst [vmem:[#allocation5 + $0x478] sm:$0xff] %v651
    %908 = vst [vmem:[#allocation5 + $0x480] sm:$0xff] %v652
    %909 = vst [vmem:[#allocation5 + $0x488] sm:$0xff] %v653
    %910 = vst [vmem:[#allocation5 + $0x490] sm:$0xff] %v654
    %911 = vst [vmem:[#allocation5 + $0x498] sm:$0xff] %v655
    %912 = vst [vmem:[#allocation5 + $0x4a0] sm:$0xff] %v656
    %913 = vst [vmem:[#allocation5 + $0x4a8] sm:$0xff] %v657
    %914 = vst [vmem:[#allocation5 + $0x4b0] sm:$0xff] %v658
    %915 = vst [vmem:[#allocation5 + $0x4b8] sm:$0xff] %v659
    %916 = vst [vmem:[#allocation5 + $0x4c0] sm:$0xff] %v660
    %917 = vst [vmem:[#allocation5 + $0x4c8] sm:$0xff] %v661
    %918 = vst [vmem:[#allocation5 + $0x4d0] sm:$0xff] %v662
    %919 = vst [vmem:[#allocation5 + $0x4d8] sm:$0xff] %v663
    %920 = vst [vmem:[#allocation5 + $0x4e0] sm:$0xff] %v664
    %921 = vst [vmem:[#allocation5 + $0x4e8] sm:$0xff] %v665
    %922 = vst [vmem:[#allocation5 + $0x4f0] sm:$0xff] %v666
    %923 = vst [vmem:[#allocation5 + $0x4f8] sm:$0xff] %v667
    %924 = vst [vmem:[#allocation5 + $0x500] sm:$0xff] %v668
    %925 = vst [vmem:[#allocation5 + $0x508] sm:$0xff] %v669
    %926 = vst [vmem:[#allocation5 + $0x510] sm:$0xff] %v670
    %927 = vst [vmem:[#allocation5 + $0x518] sm:$0xff] %v671
    %928 = vst [vmem:[#allocation5 + $0x520] sm:$0xff] %v672
    %929 = vst [vmem:[#allocation5 + $0x528] sm:$0xff] %v673
    %930 = vst [vmem:[#allocation5 + $0x530] sm:$0xff] %v674
    %931 = vst [vmem:[#allocation5 + $0x538] sm:$0xff] %v675
    %932 = vst [vmem:[#allocation5 + $0x540] sm:$0xff] %v676
    %933 = vst [vmem:[#allocation5 + $0x548] sm:$0xff] %v677
    %934 = vst [vmem:[#allocation5 + $0x550] sm:$0xff] %v678
    %935 = vst [vmem:[#allocation5 + $0x558] sm:$0xff] %v679
    %936 = vst [vmem:[#allocation5 + $0x560] sm:$0xff] %v680
    %937 = vst [vmem:[#allocation5 + $0x568] sm:$0xff] %v681
    %938 = vst [vmem:[#allocation5 + $0x570] sm:$0xff] %v682
    %939 = vst [vmem:[#allocation5 + $0x578] sm:$0xff] %v683
    %940 = vst [vmem:[#allocation5 + $0x580] sm:$0xff] %v684
    %941 = vst [vmem:[#allocation5 + $0x588] sm:$0xff] %v685
    %942 = vst [vmem:[#allocation5 + $0x590] sm:$0xff] %v686
    %943 = vst [vmem:[#allocation5 + $0x598] sm:$0xff] %v687
    %944 = vst [vmem:[#allocation5 + $0x5a0] sm:$0xff] %v688
    %945 = vst [vmem:[#allocation5 + $0x5a8] sm:$0xff] %v689
    %946 = vst [vmem:[#allocation5 + $0x5b0] sm:$0xff] %v690
    %947 = vst [vmem:[#allocation5 + $0x5b8] sm:$0xff] %v691
    %948 = vst [vmem:[#allocation5 + $0x5c0] sm:$0xff] %v692
    %949 = vst [vmem:[#allocation5 + $0x5c8] sm:$0xff] %v693
    %950 = vst [vmem:[#allocation5 + $0x5d0] sm:$0xff] %v694
    %951 = vst [vmem:[#allocation5 + $0x5d8] sm:$0xff] %v695
    %952 = vst [vmem:[#allocation5 + $0x5e0] sm:$0xff] %v696
    %953 = vst [vmem:[#allocation5 + $0x5e8] sm:$0xff] %v697
    %954 = vst [vmem:[#allocation5 + $0x5f0] sm:$0xff] %v698
    %955 = vst [vmem:[#allocation5 + $0x5f8] sm:$0xff] %v699
    %956 = vst [vmem:[#allocation5 + $0x600] sm:$0xff] %v700
    %957 = vst [vmem:[#allocation5 + $0x608] sm:$0xff] %v701
    %958 = vst [vmem:[#allocation5 + $0x610] sm:$0xff] %v702
    %959 = vst [vmem:[#allocation5 + $0x618] sm:$0xff] %v703
    %960 = vst [vmem:[#allocation5 + $0x620] sm:$0xff] %v704
    %961 = vst [vmem:[#allocation5 + $0x628] sm:$0xff] %v705
    %962 = vst [vmem:[#allocation5 + $0x630] sm:$0xff] %v706
    %963 = vst [vmem:[#allocation5 + $0x638] sm:$0xff] %v707
    %964 = vst [vmem:[#allocation5 + $0x640] sm:$0xff] %v708
    %965 = vst [vmem:[#allocation5 + $0x648] sm:$0xff] %v709
    %966 = vst [vmem:[#allocation5 + $0x650] sm:$0xff] %v710
    %967 = vst [vmem:[#allocation5 + $0x658] sm:$0xff] %v711
    %968 = vst [vmem:[#allocation5 + $0x660] sm:$0xff] %v712
    %969 = vst [vmem:[#allocation5 + $0x668] sm:$0xff] %v713
    %970 = vst [vmem:[#allocation5 + $0x670] sm:$0xff] %v714
    %971 = vst [vmem:[#allocation5 + $0x678] sm:$0xff] %v715
    %972 = vst [vmem:[#allocation5 + $0x680] sm:$0xff] %v716
    %973 = vst [vmem:[#allocation5 + $0x688] sm:$0xff] %v717
    %974 = vst [vmem:[#allocation5 + $0x690] sm:$0xff] %v718
    %975 = vst [vmem:[#allocation5 + $0x698] sm:$0xff] %v719
    %976 = vst [vmem:[#allocation5 + $0x6a0] sm:$0xff] %v720
    %977 = vst [vmem:[#allocation5 + $0x6a8] sm:$0xff] %v721
    %978 = vst [vmem:[#allocation5 + $0x6b0] sm:$0xff] %v722
    %979 = vst [vmem:[#allocation5 + $0x6b8] sm:$0xff] %v723
    %980 = vst [vmem:[#allocation5 + $0x6c0] sm:$0xff] %v724
    %981 = vst [vmem:[#allocation5 + $0x6c8] sm:$0xff] %v725
    %982 = vst [vmem:[#allocation5 + $0x6d0] sm:$0xff] %v726
    %983 = vst [vmem:[#allocation5 + $0x6d8] sm:$0xff] %v727
    %984 = vst [vmem:[#allocation5 + $0x6e0] sm:$0xff] %v728
    %985 = vst [vmem:[#allocation5 + $0x6e8] sm:$0xff] %v729
    %986 = vst [vmem:[#allocation5 + $0x6f0] sm:$0xff] %v730
    %987 = vst [vmem:[#allocation5 + $0x6f8] sm:$0xff] %v731
    %988 = vst [vmem:[#allocation5 + $0x700] sm:$0xff] %v732
    %989 = vst [vmem:[#allocation5 + $0x708] sm:$0xff] %v733
    %990 = vst [vmem:[#allocation5 + $0x710] sm:$0xff] %v734
    %991 = vst [vmem:[#allocation5 + $0x718] sm:$0xff] %v735
    %992 = vst [vmem:[#allocation5 + $0x720] sm:$0xff] %v736
    %993 = vst [vmem:[#allocation5 + $0x728] sm:$0xff] %v737
    %994 = vst [vmem:[#allocation5 + $0x730] sm:$0xff] %v738
    %995 = vst [vmem:[#allocation5 + $0x738] sm:$0xff] %v739
    %996 = vst [vmem:[#allocation5 + $0x740] sm:$0xff] %v740
    %997 = vst [vmem:[#allocation5 + $0x748] sm:$0xff] %v741
    %998 = vst [vmem:[#allocation5 + $0x750] sm:$0xff] %v742
    %999 = vst [vmem:[#allocation5 + $0x758] sm:$0xff] %v743
    %1000 = vst [vmem:[#allocation5 + $0x760] sm:$0xff] %v744
    %1001 = vst [vmem:[#allocation5 + $0x768] sm:$0xff] %v745
    %1002 = vst [vmem:[#allocation5 + $0x770] sm:$0xff] %v746
    %1003 = vst [vmem:[#allocation5 + $0x778] sm:$0xff] %v747
    %1004 = vst [vmem:[#allocation5 + $0x780] sm:$0xff] %v748
    %1005 = vst [vmem:[#allocation5 + $0x788] sm:$0xff] %v749
    %1006 = vst [vmem:[#allocation5 + $0x790] sm:$0xff] %v750
    %1007 = vst [vmem:[#allocation5 + $0x798] sm:$0xff] %v751
    %1008 = vst [vmem:[#allocation5 + $0x7a0] sm:$0xff] %v752
    %1009 = vst [vmem:[#allocation5 + $0x7a8] sm:$0xff] %v753
    %1010 = vst [vmem:[#allocation5 + $0x7b0] sm:$0xff] %v754
    %1011 = vst [vmem:[#allocation5 + $0x7b8] sm:$0xff] %v755
    %1012 = vst [vmem:[#allocation5 + $0x7c0] sm:$0xff] %v756
    %1013 = vst [vmem:[#allocation5 + $0x7c8] sm:$0xff] %v757
    %1014 = vst [vmem:[#allocation5 + $0x7d0] sm:$0xff] %v758
    %1015 = vst [vmem:[#allocation5 + $0x7d8] sm:$0xff] %v759
    %1016 = vst [vmem:[#allocation5 + $0x7e0] sm:$0xff] %v760
    %1017 = vst [vmem:[#allocation5 + $0x7e8] sm:$0xff] %v761
    %1018 = vst [vmem:[#allocation5 + $0x7f0] sm:$0xff] %v762
    %1019 = vst [vmem:[#allocation5 + $0x7f8] sm:$0xff] %v763
    // Predicated region
    $region14: #{tpu_custom_call.1} parent=1 // pred_check
      _
    $region15: #{tpu_custom_call.1} parent=1 // pred_check_branch
      %1021 = sbr.rel (0) target = $region17
    $region16: #{tpu_custom_call.1} parent=1 // pred_region
      %1023 = vsyncadd [#allocation4], 0
      %s1024 = sshll.u32 [#allocation5], 4
      %s1025 = int_to_ptr.vmem [resolvable:$true] %s1024
      %s1026 = sshll.u32 %s2, 4
      %s1027 = int_to_ptr.hbm [resolvable:$true] %s1026
      %1032 = dma.vmem_to_hbm [thread:$0]  %s1025, 32768, %s1027, [#allocation4], 1024, 1024, 64
    $region17: #{tpu_custom_call.1} parent=1 // pred_fallthru
      _
    // Predicated region
    $region18: #{tpu_custom_call.1} parent=1 // pred_check
      _
    $region19: #{tpu_custom_call.1} parent=1 // pred_check_branch
      %1034 = sbr.rel (0) target = $region21
    $region20: #{tpu_custom_call.1} parent=1 // pred_region
      %1036 = dma.done [#allocation4], 32768
    $region21: #{tpu_custom_call.1} parent=1 // pred_fallthru
      _
    %1037 = vsyncpa [#allocation3], 1
    %1038 = vsyncpa [#allocation4], 1

</llo_original>
